<compile_context>
chip_gen: v6e
topology: v6e:2x2x1
jax: 0.10.0
libtpu: 0.0.40
codegen_flags: <defaults>
</compile_context>

<pallas_src>
import functools

import jax
import jax.numpy as jnp
import numpy as np
from jax.experimental import pallas as pl
from jax.experimental.pallas import tpu as pltpu


def _select_by_index(idx, values):
    """Scalar select values[idx] from a static tuple of Python floats."""
    out = jnp.float32(values[-1])
    for i in range(len(values) - 2, -1, -1):
        out = jnp.where(idx == i, jnp.float32(values[i]), out)
    return out


def _depreprocess_kernel(x_ref, o_ref, *, scales, biases, post_mul):
    # x_ref / o_ref: (1, 1, 1, T) lane-dense VMEM tiles. Channel = grid axis 1.
    x = x_ref[...]
    dt = x.dtype
    c = pl.program_id(1)

    # Static (trace-time) specialization per mode.
    if len(set(scales)) == 1:
        a = None if float(scales[0]) == 1.0 else jnp.asarray(scales[0], dt)
    else:
        a = _select_by_index(c, scales).astype(dt)
    if len(set(biases)) == 1:
        b = jnp.asarray(biases[0], dt)
    else:
        b = _select_by_index(c, biases).astype(dt)

    y = x if a is None else x * a
    y = y + b
    if float(post_mul) != 1.0:
        y = y * jnp.asarray(post_mul, dt)
    o_ref[...] = y.astype(o_ref.dtype)


def _pick_spatial_tile(hw, itemsize, block_elems=None):
    """Pick a lane-dense spatial tile T (multiple of 128 or the full axis)."""
    if block_elems is not None:
        target = max(128, (int(block_elems) // 128) * 128)
    else:
        target = max(128, ((1 << 20) // itemsize // 128) * 128)  # ~1 MiB blocks
    if hw <= target:
        return hw  # single block covering the whole flattened spatial axis
    for cand in range(target, 127, -128):  # prefer an exact divisor of hw
        if hw % cand == 0:
            return cand
    return target  # non-dividing; Pallas masks the ragged tail block


def depreprocess(x, mode="torch", block_elems=None):
    assert mode in ("torch", "tf", "caffe"), "Unknown mode: " + str(mode)
    orig_rank = x.ndim
    if orig_rank == 3:
        x = x[None]
    assert x.ndim == 4, f"Invalid tensor rank: {x.shape}"
    N, C, H, W = x.shape
    dtype = x.dtype

    if mode == "torch":
        assert C == 3, "mode='torch' hard-codes 3-channel mean/std"
        scales = (0.229, 0.224, 0.225)
        biases = (0.485, 0.456, 0.406)
        post_mul = 255.0
        flip = False
    elif mode == "tf":
        scales = (1.0,)       # uniform affine, channel-count agnostic
        biases = (1.0,)
        post_mul = 127.5      # ((x+1)/2)*255 == (x+1)*127.5 (bit-identical)
        flip = False
    else:  # caffe
        assert C == 3, "mode='caffe' hard-codes 3-channel means"
        scales = (1.0,)
        biases = (103.939, 116.779, 123.68)
        post_mul = 1.0
        flip = True

    if flip:
        # Output channel c reads input channel C-1-c (via index_map below),
        # so the per-output-channel constants are the reversed lists.
        biases = tuple(reversed(biases))
        if len(scales) > 1:
            scales = tuple(reversed(scales))

    HW = H * W
    itemsize = jnp.dtype(dtype).itemsize
    T = _pick_spatial_tile(HW, itemsize, block_elems)
    S = pl.cdiv(HW, T)

    xr = x.reshape(N, C, 1, HW)  # lane-dense view; free (contiguous) reshape

    def x_index_map(n, c, s):
        cin = (C - 1 - c) if flip else c
        return (n, cin, 0, s)

    kernel = functools.partial(
        _depreprocess_kernel, scales=scales, biases=biases, post_mul=post_mul)

    out = pl.pallas_call(
        kernel,
        out_shape=jax.ShapeDtypeStruct((N, C, 1, HW), dtype),
        grid=(N, C, S),
        in_specs=[pl.BlockSpec((1, 1, 1, T), x_index_map)],
        out_specs=pl.BlockSpec((1, 1, 1, T), lambda n, c, s: (n, c, 0, s)),
        compiler_params=pltpu.CompilerParams(
            dimension_semantics=("parallel", "parallel", "parallel")),
    )(xr)

    out = out.reshape(N, C, H, W)
    if orig_rank == 3:
        out = out[0]
    return out


def depreprocess_ref(x, mode):
    """Pure-JAX reference mirroring the PyTorch forward exactly."""
    x = jnp.asarray(x)
    if mode == "torch":
        std = jnp.asarray([0.229, 0.224, 0.225], x.dtype).reshape(-1, 1, 1)
        means = jnp.asarray([0.485, 0.456, 0.406], x.dtype).reshape(-1, 1, 1)
        return (x * std + means) * 255.0
    elif mode == "tf":
        return ((x + 1.0) / 2.0) * 255.0
    else:  # caffe
        means = jnp.asarray([103.939, 116.779, 123.68], x.dtype).reshape(-1, 1, 1)
        y = x + means
        axis = 1 if x.ndim == 4 else 0
        return jnp.flip(y, axis=axis)


if __name__ == "__main__":
    key = jax.random.PRNGKey(0)
    ok = True

    def check(out, ref):
        return bool(np.allclose(np.asarray(out), np.asarray(ref),
                                atol=1e-4, rtol=1e-5))

    k1, k2, k3 = jax.random.split(key, 3)

    # Small canonical shapes (3 channels for the per-channel modes).
    N, C, H, W = 2, 3, 16, 16
    x4 = jax.random.normal(k1, (N, C, H, W), dtype=jnp.float32)
    x3 = x4[0]  # rank-3 (CHW) path
    for mode in ("torch", "tf", "caffe"):
        out4 = jax.block_until_ready(depreprocess(x4, mode))
        ok &= check(out4, depreprocess_ref(x4, mode))
        out3 = jax.block_until_ready(depreprocess(x3, mode))
        ok &= check(out3, depreprocess_ref(x3, mode))

    # Multi-tile spatial grid (T divides H*W): H*W = 1024, T forced to 256.
    xb = jax.random.normal(k2, (2, 3, 32, 32), dtype=jnp.float32)
    for mode in ("torch", "tf", "caffe"):
        outb = jax.block_until_ready(depreprocess(xb, mode, block_elems=256))
        ok &= check(outb, depreprocess_ref(xb, mode))

    # Ragged tail (H*W = 360 is not a multiple of the forced 128-wide tile).
    xc = jax.random.normal(k3, (1, 3, 18, 20), dtype=jnp.float32)
    for mode in ("torch", "tf", "caffe"):
        outc = jax.block_until_ready(depreprocess(xc, mode, block_elems=128))
        ok &= check(outc, depreprocess_ref(xc, mode))

    # 'tf' mode is channel-count agnostic (uniform affine).
    x_tf = jax.random.normal(key, (2, 4, 16, 16), dtype=jnp.float32)
    out_tf = jax.block_until_ready(depreprocess(x_tf, "tf"))
    ok &= check(out_tf, depreprocess_ref(x_tf, "tf"))

    if ok:
        print("KERNEL_OK")
    else:
        raise SystemExit("mismatch vs reference")
</pallas_src>

<mosaic_0001>
module attributes {stable_mosaic.version = 11 : i64} {
  func.func @_depreprocess_kernel(%arg0: i32, %arg1: i32, %arg2: i32, %arg3: memref<1x1x1x256xf32, #tpu.memory_space<vmem>>, %arg4: memref<1x1x1x256xf32, #tpu.memory_space<vmem>>) attributes {dimension_semantics = [#tpu.dimension_semantics<parallel>, #tpu.dimension_semantics<parallel>, #tpu.dimension_semantics<parallel>], iteration_bounds = array<i64: 2, 3, 1>, scalar_prefetch = 0 : i64, scratch_operands = 0 : i64, tpu.core_type = #tpu.core_type<tc>, window_params = [{transform_indices = @transform_0, window_bounds = array<i64: 1, 1, 1, 256>}, {transform_indices = @transform_1, window_bounds = array<i64: 1, 1, 1, 256>}]} {
    %c0 = arith.constant 0 : index
    %c0_0 = arith.constant 0 : index
    %c0_1 = arith.constant 0 : index
    %c0_2 = arith.constant 0 : index
    %0 = vector.load %arg3[%c0, %c0_0, %c0_1, %c0_2] : memref<1x1x1x256xf32, #tpu.memory_space<vmem>>, vector<1x1x1x256xf32>
    %c1_i32 = arith.constant 1 : i32
    %1 = arith.cmpi eq, %arg1, %c1_i32 : i32
    %cst = arith.constant 2.240000e-01 : f32
    %cst_3 = arith.constant 2.250000e-01 : f32
    %2 = arith.select %1, %cst, %cst_3 : f32
    %c0_i32 = arith.constant 0 : i32
    %3 = arith.cmpi eq, %arg1, %c0_i32 : i32
    %cst_4 = arith.constant 2.290000e-01 : f32
    %4 = arith.select %3, %cst_4, %2 : f32
    %c1_i32_5 = arith.constant 1 : i32
    %5 = arith.cmpi eq, %arg1, %c1_i32_5 : i32
    %cst_6 = arith.constant 4.560000e-01 : f32
    %cst_7 = arith.constant 4.060000e-01 : f32
    %6 = arith.select %5, %cst_6, %cst_7 : f32
    %c0_i32_8 = arith.constant 0 : i32
    %7 = arith.cmpi eq, %arg1, %c0_i32_8 : i32
    %cst_9 = arith.constant 4.850000e-01 : f32
    %8 = arith.select %7, %cst_9, %6 : f32
    %9 = vector.broadcast %4 : f32 to vector<1x1x1x256xf32>
    %10 = arith.mulf %0, %9 : vector<1x1x1x256xf32>
    %11 = vector.broadcast %8 : f32 to vector<1x1x1x256xf32>
    %12 = arith.addf %10, %11 : vector<1x1x1x256xf32>
    %cst_10 = arith.constant 2.550000e+02 : f32
    %13 = vector.broadcast %cst_10 : f32 to vector<1x1x1x256xf32>
    %14 = arith.mulf %12, %13 : vector<1x1x1x256xf32>
    %c0_11 = arith.constant 0 : index
    %c0_12 = arith.constant 0 : index
    %c0_13 = arith.constant 0 : index
    %c0_14 = arith.constant 0 : index
    %15 = vector.load %arg4[%c0_11, %c0_12, %c0_13, %c0_14] : memref<1x1x1x256xf32, #tpu.memory_space<vmem>>, vector<1x1x1x256xf32>
    tpu.vector_store %arg4[%c0_11, %c0_12, %c0_13, %c0_14], %14 {strides = array<i32>} : memref<1x1x1x256xf32, #tpu.memory_space<vmem>>, vector<1x1x1x256xf32>,
    return
  }
  func.func @transform_0(%arg0: i32, %arg1: i32, %arg2: i32) -> (i32, i32, i32, i32) {
    %c0_i32 = arith.constant 0 : i32
    %c0_i32_0 = arith.constant 0 : i32
    return %arg0, %arg1, %c0_i32, %arg2 : i32, i32, i32, i32
  }
  func.func @transform_1(%arg0: i32, %arg1: i32, %arg2: i32) -> (i32, i32, i32, i32) {
    %c0_i32 = arith.constant 0 : i32
    %c0_i32_0 = arith.constant 0 : i32
    return %arg0, %arg1, %c0_i32, %arg2 : i32, i32, i32, i32
  }
}

</mosaic_0001>

<llo_original>
// kernel: tpu_custom_call.1
$region0: #{tpu_custom_call.1}
  #allocation0 [shape = 'u32[]', space=smem, size = 0x4, offset = 0x4, fixed_abs, tag = 'smem constant byte address 0x4 - core index']
  #allocation1 [shape = 'u32[144,128]{1,0:T(1,128)}', space=vmem, size = 0x12000, scoped, tag = 'internal scratch']
  %s0 = inlined_call_operand.hbm [shape: f32[2,3,1,256], index: 0, kind: input, shape index: {}]
  %s1 = inlined_call_operand.hbm [shape: f32[2,3,1,256], index: 1, kind: output, shape index: {}]
  %s2 = sld [smem:[#allocation0]]
  $region41: #{tpu_custom_call.1} parent=0
    _
  %s4 = ssub.s32 1, %s2
  %s5 = scalar_select 0, %s4, %s2
  $region1: #{tpu_custom_call.1} parent=0
    #allocation2 [shape = 'u8[2048]{0}', space=vmem, size = 0x800, scoped, tag = 'input window, operand 0']
    #allocation3 [shape = 's32[2]{0}', space=sflag, size = 0x8, scoped, tag = 'scoped memory for tpu_custom_call.1']
    #allocation4 [shape = 's32[2]{0}', space=sflag, size = 0x8, scoped, tag = 'scoped memory for tpu_custom_call.1']
    #allocation5 [shape = 'u8[2048]{0}', space=vmem, size = 0x800, scoped, tag = 'output window, operand 0']
    %6 = vsyncpa [#allocation3], 0
    %s7 = scalar_lea.sflag [#allocation3], 1
    %8 = vsyncpa %s7, 0
    %9 = vsyncpa [#allocation4], 0
    %s10 = scalar_lea.sflag [#allocation4], 1
    %11 = vsyncpa %s10, 0
    loop: start=0, step=1, limit=8
    $region2: #{tpu_custom_call.1} parent=1 // loop_pre_header
      _
    $region3: #{tpu_custom_call.1} parent=1 // loop_header
      %s13 = sphi 0, %s17
      %p14 = scmp.ge.s32.totalorder %s13, 8
      %s20 = sphi 0, %s39
      %s21 = sphi 0, %s35
      %s22 = sphi 0, %s31
      %s23 = sphi 0, %s20
      %s24 = sphi 0, %s21
      %s25 = sphi 0, %s22
      %s26 = sphi 0, %s23
      %s27 = sphi 0, %s24
      %s28 = sphi 0, %s25
      %s46 = sphi 0, %s48
      %s49 = sphi 0, %s46
      %s50 = sphi 0, %s49
      %s66 = sphi 0, %s50
      %s76 = sphi 0, %s78
      %s79 = sphi 0, %s76
      %s80 = sphi 0, %s79
      %s96 = sphi 0, %s80
    $region4: #{tpu_custom_call.1} parent=1 // loop_header_branch
      %16 = sbr.rel (%p14) target = $region8
    $region5: #{tpu_custom_call.1} parent=1 // loop_body
      %s18 = ssub.s32 %s13, 1
      %s19 = ssub.s32 %s13, 2
      %s29 = sadd.s32 1, %s22
      %p30 = scmp.ge.s32.totalorder %s29, 1
      %s31 = scalar_select %p30, 0, %s29
      %s32 = sadd.s32 1, %s21
      %s33 = scalar_select %p30, %s32, %s21
      %p34 = scmp.ge.s32.totalorder %s33, 3
      %s35 = scalar_select %p34, 0, %s33
      %s36 = sadd.s32 1, %s20
      %s37 = scalar_select %p34, %s36, %s20
      %p38 = scmp.ge.s32.totalorder %s37, 2
      %s39 = scalar_select %p38, 0, %s37
      %s40 = ssub.s32 %s20, %s39
      %s41 = ssub.s32 %s21, %s35
      %s42 = sor.u32 %s40, %s41
      %s43 = ssub.s32 %s22, %s31
      %s44 = sor.u32 %s42, %s43
      %p45 = scmp.eq.s32.totalorder %s44, 0
      %s47 = sadd.s32 %s46, 1
      %s48 = scalar_select %p45, %s46, %s47
      %p51 = pneg %p45
      %p52 = scmp.eq.s32.totalorder %s13, 5
      %p53 = por %p51, %p52
      %p54 = scmp.ne.s32.totalorder %s46, %s49
      %p55 = scmp.eq.s32.totalorder %s13, 0
      %p56 = por %p54, %p55
      %p57 = scmp.ne.s32.totalorder %s46, %s49
      %p58 = scmp.eq.s32.totalorder %s18, 5
      %p59 = por %p57, %p58
      %p60 = scmp.ne.s32.totalorder %s49, %s50
      %p61 = scmp.eq.s32.totalorder %s18, 0
      %p62 = por %p60, %p61
      %p63 = scmp.ne.s32.totalorder %s49, %s50
      %p64 = scmp.eq.s32.totalorder %s19, 5
      %p65 = por %p63, %p64
      %p67 = scmp.ne.s32.totalorder %s50, %s66
      %p68 = scmp.eq.s32.totalorder %s19, 0
      %p69 = por %p67, %p68
      %s70 = ssub.s32 %s20, %s39
      %s71 = ssub.s32 %s21, %s35
      %s72 = sor.u32 %s70, %s71
      %s73 = ssub.s32 %s22, %s31
      %s74 = sor.u32 %s72, %s73
      %p75 = scmp.eq.s32.totalorder %s74, 0
      %s77 = sadd.s32 %s76, 1
      %s78 = scalar_select %p75, %s76, %s77
      %p81 = pneg %p75
      %p82 = scmp.eq.s32.totalorder %s13, 5
      %p83 = por %p81, %p82
      %p84 = scmp.ne.s32.totalorder %s76, %s79
      %p85 = scmp.eq.s32.totalorder %s13, 0
      %p86 = por %p84, %p85
      %p87 = scmp.ne.s32.totalorder %s76, %s79
      %p88 = scmp.eq.s32.totalorder %s18, 5
      %p89 = por %p87, %p88
      %p90 = scmp.ne.s32.totalorder %s79, %s80
      %p91 = scmp.eq.s32.totalorder %s18, 0
      %p92 = por %p90, %p91
      %p93 = scmp.ne.s32.totalorder %s79, %s80
      %p94 = scmp.eq.s32.totalorder %s19, 5
      %p95 = por %p93, %p94
      %p97 = scmp.ne.s32.totalorder %s80, %s96
      %p98 = scmp.eq.s32.totalorder %s19, 0
      %p99 = por %p97, %p98
      %p100 = scmp.le.s32.totalorder 1, %s13
      %p101 = scmp.lt.s32.totalorder %s13, 7
      %p102 = pnand %p100, %p101
      %p103 = pneg %p102
      // Predicated region
      $region9: #{tpu_custom_call.1} parent=5 // pred_check
        _
      $region10: #{tpu_custom_call.1} parent=5 // pred_check_branch
        %105 = sbr.rel (%p102) target = $region12
      $region11: #{tpu_custom_call.1} parent=5 // pred_region
        %s106 = ssub.s32 %s13, 1
      $region12: #{tpu_custom_call.1} parent=5 // pred_fallthru
        _
      %p107 = scmp.lt.s32.totalorder %s13, 6
      // Predicated region
      $region13: #{tpu_custom_call.1} parent=5 // pred_check
        %p108 = pneg %p107
      $region14: #{tpu_custom_call.1} parent=5 // pred_check_branch
        %110 = sbr.rel (%p108) target = $region16
      $region15: #{tpu_custom_call.1} parent=5 // pred_region
        // Predicated region
        $region17: #{tpu_custom_call.1} parent=15 // pred_check
          %p111 = pneg %p56
        $region18: #{tpu_custom_call.1} parent=15 // pred_check_branch
          %113 = sbr.rel (%p111) target = $region20
        $region19: #{tpu_custom_call.1} parent=15 // pred_region
          %s114 = sand.u32 %s46, 1
          %s115 = scalar_lea.sflag [#allocation3], %s114
          %s116 = sand.u32 %s46, 1
          %s117 = smul.addr %s116, 2
          %s118 = scalar_lea.vmem [#allocation2], %s117
          %s119 = smul.u32 2, %s22
          %s121 = ssub.s32 32, 32
          %122 = vsyncadd %s115, %s121
          %s123 = smul.addr %s21, 2
          %s124 = sadd.s32 %s119, %s123
          %s125 = smul.addr %s20, 6
          %s126 = sadd.s32 %s124, %s125
          %s127 = smul.addr %s126, 16
          %s128 = scalar_lea.hbm %s0, %s127
          %s130 = sshll.u32 %s118, 4
          %s131 = int_to_ptr.vmem [resolvable:$true] %s130
          %133 = dma.hbm_to_vmem [thread:$0]  %s128, 32, %s131, %s115
        $region20: #{tpu_custom_call.1} parent=15 // pred_fallthru
          _
      $region16: #{tpu_custom_call.1} parent=5 // pred_fallthru
        _
      %p134 = scmp.le.s32.totalorder 1, %s13
      %p135 = scmp.lt.s32.totalorder %s13, 7
      %p136 = pnand %p134, %p135
      %p137 = pneg %p136
      // Predicated region
      $region21: #{tpu_custom_call.1} parent=5 // pred_check
        _
      $region22: #{tpu_custom_call.1} parent=5 // pred_check_branch
        %139 = sbr.rel (%p136) target = $region24
      $region23: #{tpu_custom_call.1} parent=5 // pred_region
        %s140 = ssub.s32 %s13, 1
        %s141 = sand.u32 %s49, 1
        %s142 = scalar_lea.sflag [#allocation3], %s141
        %s143 = sand.u32 %s49, 1
        %s144 = smul.addr %s143, 2
        %s145 = scalar_lea.vmem [#allocation2], %s144
        // Predicated region
        $region25: #{tpu_custom_call.1} parent=23 // pred_check
          %p146 = pneg %p62
        $region26: #{tpu_custom_call.1} parent=23 // pred_check_branch
          %148 = sbr.rel (%p146) target = $region28
        $region27: #{tpu_custom_call.1} parent=23 // pred_region
          %149 = dma.done %s142, 32
        $region28: #{tpu_custom_call.1} parent=23 // pred_fallthru
          _
        %s150 = sand.u32 %s49, 1
        %s151 = scalar_lea.sflag [#allocation3], %s150
        %s152 = sand.u32 %s49, 1
        %s153 = smul.addr %s152, 2
        %s154 = scalar_lea.vmem [#allocation2], %s153
        %p155 = pneg %p62
        %p156 = pneg %p59
        %p157 = pneg %p92
        %p158 = pneg %p89
        %s159 = sand.u32 %s79, 1
        %s160 = scalar_lea.sflag [#allocation4], %s159
        %s161 = sand.u32 %s79, 1
        %s162 = smul.addr %s161, 2
        %s163 = scalar_lea.vmem [#allocation5], %s162
        %s164 = smul.u32 2, %s25
        %s165 = smul.u32 2, %s25
        %v166 = vld [vmem:[%s145] sm:$0x3]
        %p167 = scmp.eq.s32.totalorder %s24, 1
        %s168 = scalar_select %p167, 0.224, 0.225
        %p169 = scmp.eq.s32.totalorder %s24, 0
        %s170 = scalar_select %p169, 0.229, %s168
        %s171 = scalar_select %p167, 0.456, 0.406
        %s172 = scalar_select %p169, 0.485, %s171
        %v173 = vstv %s170
        %v174 = vmul.f32 %v166, %v173
        %v175 = vstv %s172
        %v176 = vadd.f32 %v174, %v175
        %v177 = vmul.f32 %v176, 255.0
        %v178 = vlaneseq
        %vm179 = vcmp.ge.s32.totalorder %v178, 0
        %vm180 = vcmp.lt.s32.totalorder %v178, 256
        %vm181 = vmand %vm179, %vm180
        %182 = vst.msk [vmem:[%s163] sm:$0x3] %vm181, %v177
        %s183 = sand.u32 %s79, 1
        %s184 = scalar_lea.sflag [#allocation4], %s183
        %s185 = sand.u32 %s79, 1
        %s186 = smul.addr %s185, 2
        %s187 = scalar_lea.vmem [#allocation5], %s186
        // Predicated region
        $region29: #{tpu_custom_call.1} parent=23 // pred_check
          %p188 = pneg %p89
        $region30: #{tpu_custom_call.1} parent=23 // pred_check_branch
          %190 = sbr.rel (%p188) target = $region32
        $region31: #{tpu_custom_call.1} parent=23 // pred_region
          %s191 = smul.u32 2, %s25
          %s193 = ssub.s32 32, 32
          %194 = vsyncadd %s184, %s193
          %s195 = smul.addr %s24, 2
          %s196 = sadd.s32 %s191, %s195
          %s197 = smul.addr %s23, 6
          %s198 = sadd.s32 %s196, %s197
          %s199 = smul.addr %s198, 16
          %s200 = scalar_lea.hbm %s1, %s199
          %s202 = sshll.u32 %s187, 4
          %s203 = int_to_ptr.vmem [resolvable:$true] %s202
          %205 = dma.vmem_to_hbm [thread:$0]  %s203, 32, %s200, %s184
        $region32: #{tpu_custom_call.1} parent=23 // pred_fallthru
          _
      $region24: #{tpu_custom_call.1} parent=5 // pred_fallthru
        _
      %p206 = scmp.le.s32.totalorder 2, %s13
      // Predicated region
      $region33: #{tpu_custom_call.1} parent=5 // pred_check
        %p207 = pneg %p206
      $region34: #{tpu_custom_call.1} parent=5 // pred_check_branch
        %209 = sbr.rel (%p207) target = $region36
      $region35: #{tpu_custom_call.1} parent=5 // pred_region
        %s210 = ssub.s32 %s13, 2
        // Predicated region
        $region37: #{tpu_custom_call.1} parent=35 // pred_check
          %p211 = pneg %p95
        $region38: #{tpu_custom_call.1} parent=35 // pred_check_branch
          %213 = sbr.rel (%p211) target = $region40
        $region39: #{tpu_custom_call.1} parent=35 // pred_region
          %s214 = sand.u32 %s80, 1
          %s215 = scalar_lea.sflag [#allocation4], %s214
          %s216 = sand.u32 %s80, 1
          %s217 = smul.addr %s216, 2
          %s218 = scalar_lea.vmem [#allocation5], %s217
          %219 = dma.done %s215, 32
        $region40: #{tpu_custom_call.1} parent=35 // pred_fallthru
          _
      $region36: #{tpu_custom_call.1} parent=5 // pred_fallthru
        _
    $region6: #{tpu_custom_call.1} parent=1 // loop_footer
      %s17 = sadd.s32 1, %s13
    $region7: #{tpu_custom_call.1} parent=1 // loop_footer_branch
      %12 = sbr.rel target = $region3
    $region8: #{tpu_custom_call.1} parent=1 // loop_exit
      _
    %220 = vsyncpa [#allocation3], 1
    %s221 = scalar_lea.sflag [#allocation3], 1
    %222 = vsyncpa %s221, 1
    %223 = vsyncpa [#allocation4], 1
    %s224 = scalar_lea.sflag [#allocation4], 1
    %225 = vsyncpa %s224, 1

</llo_original>
